<compile_context>
chip_gen: v7x
topology: tpu7x:2x2x1
jax: 0.10.0
libtpu: 0.0.40
codegen_flags: <defaults>
</compile_context>

<pallas_src>
import jax
import jax.numpy as jnp
import numpy as np
from jax.experimental import pallas as pl
from jax.experimental.pallas import tpu as pltpu


_LANE = 128
_VMEM_LIMIT = 48 * 1024 * 1024  # headroom for v7x (64 MiB physical VMEM)


def _pick_tile(dim, candidates):
    """Largest candidate that evenly divides `dim`, else the full dim
    (a full-extent block always satisfies the (8,128) constraint)."""
    for c in candidates:
        if dim % c == 0:
            return c
    return dim


def _round_up(x, m):
    return (x + m - 1) // m * m


# ---------------------------------------------------------------------------
# Kernel 1: feature projection  xw = x_flat @ W    ((B*N, F_in) @ (F_in, F))
# ---------------------------------------------------------------------------
def _proj_kernel(x_ref, w_ref, o_ref, acc_ref):
    @pl.when(pl.program_id(2) == 0)
    def _():
        acc_ref[...] = jnp.zeros_like(acc_ref)

    acc_ref[...] += jnp.dot(x_ref[...], w_ref[...],
                            preferred_element_type=jnp.float32)

    @pl.when(pl.program_id(2) == pl.num_programs(2) - 1)
    def _():
        o_ref[...] = acc_ref[...].astype(o_ref.dtype)


def _project(x_flat, w):
    M, K = x_flat.shape
    _, F = w.shape
    tm = _pick_tile(M, (512, 256, 128, 64, 32, 16, 8))
    tk = _pick_tile(K, (512, 256, 128))
    tn = _pick_tile(F, (512, 256, 128))
    grid = (M // tm, F // tn, K // tk)
    flops = 2 * M * K * F
    bytes_accessed = 4 * (M * K + K * F + M * F)
    return pl.pallas_call(
        _proj_kernel,
        out_shape=jax.ShapeDtypeStruct((M, F), x_flat.dtype),
        grid_spec=pltpu.PrefetchScalarGridSpec(
            num_scalar_prefetch=0,
            grid=grid,
            in_specs=[pl.BlockSpec((tm, tk), lambda i, j, k: (i, k)),
                      pl.BlockSpec((tk, tn), lambda i, j, k: (k, j))],
            out_specs=pl.BlockSpec((tm, tn), lambda i, j, k: (i, j)),
            scratch_shapes=[pltpu.VMEM((tm, tn), jnp.float32)]),
        compiler_params=pltpu.CompilerParams(
            dimension_semantics=("parallel", "parallel", "arbitrary"),
            vmem_limit_bytes=_VMEM_LIMIT),
        cost_estimate=pl.CostEstimate(flops=flops, transcendentals=0,
                                      bytes_accessed=bytes_accessed),
    )(x_flat, w)


# ---------------------------------------------------------------------------
# Kernel 2: neighborhood aggregation  out[b] = adj @ xw[b]  (+ bias)
#   grid = (batch, node-row tiles, reduction over adj columns)
# ---------------------------------------------------------------------------
def _agg_kernel(adj_ref, xw_ref, o_ref, acc_ref):
    k = pl.program_id(2)

    @pl.when(k == 0)
    def _():
        acc_ref[...] = jnp.zeros_like(acc_ref)

    acc_ref[...] += jnp.dot(adj_ref[...], xw_ref[0],
                            preferred_element_type=jnp.float32)

    @pl.when(k == pl.num_programs(2) - 1)
    def _():
        o_ref[0] = acc_ref[...].astype(o_ref.dtype)


def _agg_bias_kernel(adj_ref, xw_ref, b_ref, o_ref, acc_ref):
    k = pl.program_id(2)

    @pl.when(k == 0)
    def _():
        acc_ref[...] = jnp.zeros_like(acc_ref)

    acc_ref[...] += jnp.dot(adj_ref[...], xw_ref[0],
                            preferred_element_type=jnp.float32)

    @pl.when(k == pl.num_programs(2) - 1)
    def _():
        o_ref[0] = (acc_ref[...]
                    + b_ref[...].astype(jnp.float32)).astype(o_ref.dtype)


def _aggregate(adj, xw, bias, out_dtype):
    N = adj.shape[0]
    B, _, F = xw.shape
    tr = _pick_tile(N, (512, 256, 128, 64, 32, 16, 8))   # node-row tile
    tk = _pick_tile(N, (512, 256, 128))                   # reduction tile
    grid = (B, N // tr, N // tk)
    flops = 2 * B * N * N * F
    bytes_accessed = 4 * (N * N + 2 * B * N * F)

    adj_spec = pl.BlockSpec((tr, tk), lambda b, r, k: (r, k))
    xw_spec = pl.BlockSpec((1, tk, F), lambda b, r, k: (b, k, 0))
    o_spec = pl.BlockSpec((1, tr, F), lambda b, r, k: (b, r, 0))
    scratch = [pltpu.VMEM((tr, F), jnp.float32)]
    cparams = pltpu.CompilerParams(
        dimension_semantics=("parallel", "parallel", "arbitrary"),
        vmem_limit_bytes=_VMEM_LIMIT)
    cost = pl.CostEstimate(flops=flops, transcendentals=0,
                           bytes_accessed=bytes_accessed)
    out_shape = jax.ShapeDtypeStruct((B, N, F), out_dtype)

    if bias is None:
        return pl.pallas_call(
            _agg_kernel,
            out_shape=out_shape,
            grid_spec=pltpu.PrefetchScalarGridSpec(
                num_scalar_prefetch=0, grid=grid,
                in_specs=[adj_spec, xw_spec],
                out_specs=o_spec,
                scratch_shapes=scratch),
            compiler_params=cparams,
            cost_estimate=cost,
        )(adj, xw)

    b2 = bias.reshape(1, F)                     # (1, F_pad): lane-dense block
    b_spec = pl.BlockSpec((1, F), lambda b, r, k: (0, 0))
    return pl.pallas_call(
        _agg_bias_kernel,
        out_shape=out_shape,
        grid_spec=pltpu.PrefetchScalarGridSpec(
            num_scalar_prefetch=0, grid=grid,
            in_specs=[adj_spec, xw_spec, b_spec],
            out_specs=o_spec,
            scratch_shapes=scratch),
        compiler_params=cparams,
        cost_estimate=cost,
    )(adj, xw, b2)


# ---------------------------------------------------------------------------
# Public wrapper
# ---------------------------------------------------------------------------
def graph_convolution(x, adj, weight, bias=None, *, compute_dtype=None):
    """out[b] = adj @ x[b] @ weight (+ bias), computed as adj @ (x @ W)."""
    B, N, F_in = x.shape
    F_out = weight.shape[1]
    assert adj.shape == (N, N)
    assert weight.shape[0] == F_in

    out_dtype = x.dtype

    # Pad the output-feature (lane) dim to a multiple of 128 -> lane-dense
    # stores for both xw and out. Zero columns contribute nothing (exact).
    F_pad = max(_LANE, _round_up(F_out, _LANE))
    if F_pad != F_out:
        weight = jnp.pad(weight, ((0, 0), (0, F_pad - F_out)))
        if bias is not None:
            bias = jnp.pad(bias, (0, F_pad - F_out))

    # Optional low-precision compute (bf16-native MXUs on v6e/v7x);
    # accumulation stays f32 inside the kernels.
    if compute_dtype is not None:
        x = x.astype(compute_dtype)
        adj = adj.astype(compute_dtype)
        weight = weight.astype(compute_dtype)

    # Kernel 1: one big projection over the flattened batch (large M for MXU).
    # Re-association is cheaper whenever F_out <= F_in, identical when equal.
    xw = _project(x.reshape(B * N, F_in), weight)       # (B*N, F_pad)
    xw = xw.reshape(B, N, F_pad)

    # Kernel 2: per-batch aggregation, row-tiled + K-reduction accumulator.
    out = _aggregate(adj, xw, bias, out_dtype)          # (B, N, F_pad)

    if F_pad != F_out:
        out = out[..., :F_out]
    return out


def init_gcn_params(key, num_in, num_out, use_bias=False):
    """Matches nn.init.kaiming_normal_ on a (num_in, num_out) tensor:
    fan_in = size(1) = num_out, gain = sqrt(2) -> std = sqrt(2 / num_out)."""
    (wkey,) = jax.random.split(key, 1)
    std = np.sqrt(2.0 / num_out)
    weight = std * jax.random.normal(wkey, (num_in, num_out), dtype=jnp.float32)
    bias = jnp.zeros((num_out,), dtype=jnp.float32) if use_bias else None
    return weight, bias


if __name__ == "__main__":
    key = jax.random.PRNGKey(0)
    k_x, k_adj, k_w = jax.random.split(key, 3)

    B, N, F_IN, F_OUT = 2, 16, 32, 32

    x = jax.random.normal(k_x, (B, N, F_IN), dtype=jnp.float32)
    a = jax.random.uniform(k_adj, (N, N), dtype=jnp.float32)
    adj = (a + a.T) * 0.5

    weight, bias = init_gcn_params(k_w, F_IN, F_OUT, use_bias=True)

    # plain-JAX reference of the torch.matmul chain
    ref = jnp.einsum("nm,bmi->bni", adj, x) @ weight + bias

    # f32 path (matches the PyTorch module's numerics)
    out = jax.block_until_ready(graph_convolution(x, adj, weight, bias))
    np.testing.assert_allclose(np.asarray(out), np.asarray(ref),
                               rtol=1e-5, atol=1e-5)

    # no-bias path
    out_nb = jax.block_until_ready(graph_convolution(x, adj, weight, None))
    np.testing.assert_allclose(np.asarray(out_nb), np.asarray(ref - bias),
                               rtol=1e-5, atol=1e-5)

    # bf16 fast path (f32 accumulation inside the kernels)
    out_bf16 = jax.block_until_ready(
        graph_convolution(x, adj, weight, bias, compute_dtype=jnp.bfloat16))
    np.testing.assert_allclose(np.asarray(out_bf16), np.asarray(ref),
                               rtol=5e-2, atol=5e-2)

    print("KERNEL_OK")
</pallas_src>

<mosaic_0001>
module attributes {stable_mosaic.version = 11 : i64} {
  func.func @_proj_kernel(%arg0: i32, %arg1: i32, %arg2: i32, %arg3: memref<32x32xf32, #tpu.memory_space<vmem>>, %arg4: memref<32x128xf32, #tpu.memory_space<vmem>>, %arg5: memref<32x128xf32, #tpu.memory_space<vmem>>, %arg6: memref<32x128xf32, #tpu.memory_space<vmem>>) attributes {dimension_semantics = [#tpu.dimension_semantics<parallel>, #tpu.dimension_semantics<parallel>, #tpu.dimension_semantics<arbitrary>], iteration_bounds = array<i64: 1, 1, 1>, scalar_prefetch = 0 : i64, scratch_operands = 1 : i64, tpu.core_type = #tpu.core_type<tc>, window_params = [{transform_indices = @transform_0, window_bounds = array<i64: 32, 32>}, {transform_indices = @transform_1, window_bounds = array<i64: 32, 128>}, {transform_indices = @transform_2, window_bounds = array<i64: 32, 128>}]} {
    %c0_i32 = arith.constant 0 : i32
    %0 = arith.cmpi eq, %arg2, %c0_i32 : i32
    %1 = arith.extui %0 : i1 to i32
    %c0_i32_0 = arith.constant 0 : i32
    %2 = arith.cmpi ne, %1, %c0_i32_0 : i32
    scf.if %2 {
      %cst_10 = arith.constant 0.000000e+00 : f32
      %12 = vector.broadcast %cst_10 : f32 to vector<32x128xf32>
      %c0_11 = arith.constant 0 : index
      %c0_12 = arith.constant 0 : index
      %13 = vector.load %arg6[%c0_11, %c0_12] : memref<32x128xf32, #tpu.memory_space<vmem>>, vector<32x128xf32>
      tpu.vector_store %arg6[%c0_11, %c0_12], %12 {strides = array<i32>} : memref<32x128xf32, #tpu.memory_space<vmem>>, vector<32x128xf32>,
    } else {
    }
    %c0 = arith.constant 0 : index
    %c0_1 = arith.constant 0 : index
    %3 = vector.load %arg6[%c0, %c0_1] : memref<32x128xf32, #tpu.memory_space<vmem>>, vector<32x128xf32>
    %c0_2 = arith.constant 0 : index
    %c0_3 = arith.constant 0 : index
    %4 = vector.load %arg3[%c0_2, %c0_3] : memref<32x32xf32, #tpu.memory_space<vmem>>, vector<32x32xf32>
    %c0_4 = arith.constant 0 : index
    %c0_5 = arith.constant 0 : index
    %5 = vector.load %arg4[%c0_4, %c0_5] : memref<32x128xf32, #tpu.memory_space<vmem>>, vector<32x128xf32>
    %cst = arith.constant dense<0.000000e+00> : vector<32x128xf32>
    %6 = tpu.matmul %4, %5, %cst {dimension_numbers = #tpu.dot_dimension_numbers<[1], [0], [0], [1], [0, 0, 1, 1], [], []>} : vector<32x32xf32>, vector<32x128xf32>, vector<32x128xf32> -> vector<32x128xf32>
    %7 = arith.addf %3, %6 : vector<32x128xf32>
    %c0_6 = arith.constant 0 : index
    %c0_7 = arith.constant 0 : index
    %8 = vector.load %arg6[%c0_6, %c0_7] : memref<32x128xf32, #tpu.memory_space<vmem>>, vector<32x128xf32>
    tpu.vector_store %arg6[%c0_6, %c0_7], %7 {strides = array<i32>} : memref<32x128xf32, #tpu.memory_space<vmem>>, vector<32x128xf32>,
    %c0_i32_8 = arith.constant 0 : i32
    %9 = arith.cmpi eq, %arg2, %c0_i32_8 : i32
    %10 = arith.extui %9 : i1 to i32
    %c0_i32_9 = arith.constant 0 : i32
    %11 = arith.cmpi ne, %10, %c0_i32_9 : i32
    scf.if %11 {
      %c0_10 = arith.constant 0 : index
      %c0_11 = arith.constant 0 : index
      %12 = vector.load %arg6[%c0_10, %c0_11] : memref<32x128xf32, #tpu.memory_space<vmem>>, vector<32x128xf32>
      %c0_12 = arith.constant 0 : index
      %c0_13 = arith.constant 0 : index
      %13 = vector.load %arg5[%c0_12, %c0_13] : memref<32x128xf32, #tpu.memory_space<vmem>>, vector<32x128xf32>
      tpu.vector_store %arg5[%c0_12, %c0_13], %12 {strides = array<i32>} : memref<32x128xf32, #tpu.memory_space<vmem>>, vector<32x128xf32>,
    } else {
    }
    return
  }
  func.func @transform_0(%arg0: i32, %arg1: i32, %arg2: i32) -> (i32, i32) {
    %c0_i32 = arith.constant 0 : i32
    return %arg0, %arg2 : i32, i32
  }
  func.func @transform_1(%arg0: i32, %arg1: i32, %arg2: i32) -> (i32, i32) {
    %c0_i32 = arith.constant 0 : i32
    return %arg2, %arg1 : i32, i32
  }
  func.func @transform_2(%arg0: i32, %arg1: i32, %arg2: i32) -> (i32, i32) {
    %c0_i32 = arith.constant 0 : i32
    return %arg0, %arg1 : i32, i32
  }
}

</mosaic_0001>

<llo_original>
// kernel: tpu_custom_call.1
$region0: #{tpu_custom_call.1}
  #allocation0 [shape = 'u32[]', space=smem, size = 0x4, offset = 0x4, fixed_abs, tag = 'smem constant byte address 0x4 - core index']
  #allocation1 [shape = 'u32[144,128]{1,0:T(1,128)}', space=vmem, size = 0x12000, scoped, tag = 'internal scratch']
  #allocation2 [shape = 'f32[32,128]{1,0:T(8,128)}', space=vmem, size = 0x4000, scoped, tag = 'scratch operand']
  %s0 = inlined_call_operand.hbm [shape: f32[32,32], index: 0, kind: input, shape index: {}]
  %s1 = inlined_call_operand.hbm [shape: f32[32,128], index: 1, kind: input, shape index: {}]
  %s2 = inlined_call_operand.hbm [shape: f32[32,128], index: 2, kind: output, shape index: {}]
  %s3 = sld [smem:[#allocation0]]
  $region34: #{tpu_custom_call.1} parent=0
    _
  %s5 = ssub.s32 1, %s3
  %s6 = scalar_select 0, %s5, %s3
  $region1: #{tpu_custom_call.1} parent=0
    #allocation3 [shape = 'u8[16384]{0}', space=vmem, size = 0x4000, scoped, tag = 'input window, operand 0, single buffered']
    #allocation4 [shape = 's32[1]{0}', space=sflag, size = 0x4, scoped, tag = 'scoped memory for tpu_custom_call.1']
    #allocation5 [shape = 's32[1]{0}', space=sflag, size = 0x4, scoped, tag = 'scoped memory for tpu_custom_call.1']
    #allocation6 [shape = 'u8[16384]{0}', space=vmem, size = 0x4000, scoped, tag = 'input window, operand 1, single buffered']
    #allocation7 [shape = 's32[1]{0}', space=sflag, size = 0x4, scoped, tag = 'scoped memory for tpu_custom_call.1']
    #allocation8 [shape = 'u8[16384]{0}', space=vmem, size = 0x4000, scoped, tag = 'output window, operand 0, single buffered']
    %7 = vsyncpa [#allocation4], 0
    %8 = vsyncpa [#allocation7], 0
    %9 = vsyncpa [#allocation5], 0
    // Predicated region
    $region2: #{tpu_custom_call.1} parent=1 // pred_check
      _
    $region3: #{tpu_custom_call.1} parent=1 // pred_check_branch
      %11 = sbr.rel (0) target = $region5
    $region4: #{tpu_custom_call.1} parent=1 // pred_region
      %s13 = ssub.s32 512, 512
      %14 = vsyncadd [#allocation4], %s13
      %s15 = sshll.u32 [#allocation3], 4
      %s16 = int_to_ptr.vmem [resolvable:$true] %s15
      %21 = dma.hbm_to_vmem [thread:$0]  %s0, 512, %s16, [#allocation4], 128, 128, 8
    $region5: #{tpu_custom_call.1} parent=1 // pred_fallthru
      _
    // Predicated region
    $region6: #{tpu_custom_call.1} parent=1 // pred_check
      _
    $region7: #{tpu_custom_call.1} parent=1 // pred_check_branch
      %23 = sbr.rel (0) target = $region9
    $region8: #{tpu_custom_call.1} parent=1 // pred_region
      %s25 = ssub.s32 512, 512
      %26 = vsyncadd [#allocation7], %s25
      %s27 = sshll.u32 [#allocation6], 4
      %s28 = int_to_ptr.vmem [resolvable:$true] %s27
      %33 = dma.hbm_to_vmem [thread:$0]  %s1, 512, %s28, [#allocation7], 128, 128, 8
    $region9: #{tpu_custom_call.1} parent=1 // pred_fallthru
      _
    // Predicated region
    $region10: #{tpu_custom_call.1} parent=1 // pred_check
      _
    $region11: #{tpu_custom_call.1} parent=1 // pred_check_branch
      %35 = sbr.rel (0) target = $region13
    $region12: #{tpu_custom_call.1} parent=1 // pred_region
      %36 = dma.done [#allocation4], 512
    $region13: #{tpu_custom_call.1} parent=1 // pred_fallthru
      _
    // Predicated region
    $region14: #{tpu_custom_call.1} parent=1 // pred_check
      _
    $region15: #{tpu_custom_call.1} parent=1 // pred_check_branch
      %38 = sbr.rel (0) target = $region17
    $region16: #{tpu_custom_call.1} parent=1 // pred_region
      %39 = dma.done [#allocation7], 512
    $region17: #{tpu_custom_call.1} parent=1 // pred_fallthru
      _
    %p40 = scmp.eq.s32.totalorder 0, 0
    // Predicated region
    $region18: #{tpu_custom_call.1} parent=1 // pred_check
      %p41 = pneg %p40
    $region19: #{tpu_custom_call.1} parent=1 // pred_check_branch
      %43 = sbr.rel (%p41) target = $region21
    $region20: #{tpu_custom_call.1} parent=1 // pred_region
      %44 = vst [vmem:[#allocation2] sm:$0xff] 0.0
      %45 = vst [vmem:[#allocation2 + $0x8] sm:$0xff] 0.0
      %46 = vst [vmem:[#allocation2 + $0x10] sm:$0xff] 0.0
      %47 = vst [vmem:[#allocation2 + $0x18] sm:$0xff] 0.0
    $region21: #{tpu_custom_call.1} parent=1 // pred_fallthru
      _
    %v48 = vld [vmem:[#allocation2] sm:$0xff]
    %v49 = vld [vmem:[#allocation2 + $0x8] sm:$0xff]
    %v50 = vld [vmem:[#allocation2 + $0x10] sm:$0xff]
    %v51 = vld [vmem:[#allocation2 + $0x18] sm:$0xff]
    %v52 = vld [vmem:[#allocation3] sm:$0xff]
    %v53 = vld [vmem:[#allocation3 + $0x8] sm:$0xff]
    %v54 = vld [vmem:[#allocation3 + $0x10] sm:$0xff]
    %v55 = vld [vmem:[#allocation3 + $0x18] sm:$0xff]
    %v56 = vld [vmem:[#allocation6] sm:$0xff]
    %v57 = vld [vmem:[#allocation6 + $0x8] sm:$0xff]
    %v58 = vld [vmem:[#allocation6 + $0x10] sm:$0xff]
    %v59 = vld [vmem:[#allocation6 + $0x18] sm:$0xff]
    %vm60 = vcmask 261120
    %v62 = vsel %vm60, %v52, 0
    %v65 = vsel %vm60, %v53, 0
    %v68 = vsel %vm60, %v54, 0
    %v71 = vsel %vm60, %v55, 0
    %73 = vmatprep.subr.mxu0 0.0
    %74 = vmatpush1.msra.mxu0 %v56
    %75 = vmatprep.subr.mxu0 0.0
    %76 = vmatpush1.msra.mxu0 %v57
    %77 = vmatprep.subr.mxu0 0.0
    %78 = vmatpush1.msra.mxu0 %v58
    %79 = vmatprep.subr.mxu0 0.0
    %80 = vmatpush1.msra.mxu0 %v59
    %81 = vmatprep.subr.mxu0 0.0
    %82 = vmatpush1.msra.mxu0 0.0
    %83 = vmatprep.subr.mxu0 0.0
    %84 = vmatpush1.msra.mxu0 0.0
    %85 = vmatprep.subr.mxu0 0.0
    %86 = vmatpush1.msra.mxu0 0.0
    %87 = vmatprep.subr.mxu0 0.0
    %88 = vmatpush1.msra.mxu0 0.0
    %89 = vmatprep.subr.mxu0 0.0
    %90 = vmatpush1.msra.mxu0 0.0
    %91 = vmatprep.subr.mxu0 0.0
    %92 = vmatpush1.msra.mxu0 0.0
    %93 = vmatprep.subr.mxu0 0.0
    %94 = vmatpush1.msra.mxu0 0.0
    %95 = vmatprep.subr.mxu0 0.0
    %96 = vmatpush1.msra.mxu0 0.0
    %97 = vmatprep.subr.mxu0 0.0
    %98 = vmatpush1.msra.mxu0 0.0
    %99 = vmatprep.subr.mxu0 0.0
    %100 = vmatpush1.msra.mxu0 0.0
    %101 = vmatprep.subr.mxu0 0.0
    %102 = vmatpush1.msra.mxu0 0.0
    %103 = vmatprep.subr.mxu0 0.0
    %104 = vmatpush1.msra.mxu0 0.0
    %105 = vmatprep.subr.mxu0 0.0
    %106 = vmatpush1.msra.mxu0 0.0
    %107 = vmatprep.subr.mxu0 0.0
    %108 = vmatpush1.msra.mxu0 0.0
    %109 = vmatprep.subr.mxu0 0.0
    %110 = vmatpush1.msra.mxu0 0.0
    %111 = vmatprep.subr.mxu0 0.0
    %112 = vmatpush1.msra.mxu0 0.0
    %113 = vmatprep.subr.mxu0 0.0
    %114 = vmatpush1.msra.mxu0 0.0
    %115 = vmatprep.subr.mxu0 0.0
    %116 = vmatpush1.msra.mxu0 0.0
    %117 = vmatprep.subr.mxu0 0.0
    %118 = vmatpush1.msra.mxu0 0.0
    %119 = vmatprep.subr.mxu0 0.0
    %120 = vmatpush1.msra.mxu0 0.0
    %121 = vmatprep.subr.mxu0 0.0
    %122 = vmatpush1.msra.mxu0 0.0
    %123 = vmatprep.subr.mxu0 0.0
    %124 = vmatpush1.msra.mxu0 0.0
    %125 = vmatprep.subr.mxu0 0.0
    %126 = vmatpush1.msra.mxu0 0.0
    %127 = vmatprep.subr.mxu0 0.0
    %128 = vmatpush1.msra.mxu0 0.0
    %129 = vmatprep.subr.mxu0 0.0
    %130 = vmatpush1.msra.mxu0 0.0
    %131 = vmatprep.subr.mxu0 0.0
    %132 = vmatpush1.msra.mxu0 0.0
    %133 = vmatprep.subr.mxu0 0.0
    %134 = vmatpush1.msra.mxu0 0.0
    %135 = vmatprep.subr.mxu0 0.0
    %136 = vmatpush1.msra.mxu0 0.0
    %137 = vmatprep.mubr.f32.mxu0 0.0
    %138 = vmatmul.mubr.f32.gmra.mrb[0].mxu0 %v62
    %v139 = vpop.f32.mrb[0].mxu0
    %v140 = vadd.f32 0.0, %v139
    %v141 = vpop.f32.mrb[0].mxu0
    %142 = vmatprep.mubr.f32.mxu0 0.0
    %143 = vmatmul.mubr.f32.gmra.mrb[0].mxu0 %v65
    %v144 = vpop.f32.mrb[0].mxu0
    %v145 = vadd.f32 0.0, %v144
    %v146 = vpop.f32.mrb[0].mxu0
    %147 = vmatprep.mubr.f32.mxu0 0.0
    %148 = vmatmul.mubr.f32.gmra.mrb[0].mxu0 %v68
    %v149 = vpop.f32.mrb[0].mxu0
    %v150 = vadd.f32 0.0, %v149
    %v151 = vpop.f32.mrb[0].mxu0
    %152 = vmatprep.mubr.f32.mxu0 0.0
    %153 = vmatmul.mubr.f32.gmra.mrb[0].mxu0 %v71
    %v154 = vpop.f32.mrb[0].mxu0
    %v155 = vadd.f32 0.0, %v154
    %v156 = vpop.f32.mrb[0].mxu0
    %157 = vdwg.mxu0
    %v158 = vadd.f32 %v48, %v140
    %v159 = vadd.f32 %v49, %v145
    %v160 = vadd.f32 %v50, %v150
    %v161 = vadd.f32 %v51, %v155
    %162 = vst [vmem:[#allocation2] sm:$0xff] %v158
    %163 = vst [vmem:[#allocation2 + $0x8] sm:$0xff] %v159
    %164 = vst [vmem:[#allocation2 + $0x10] sm:$0xff] %v160
    %165 = vst [vmem:[#allocation2 + $0x18] sm:$0xff] %v161
    // Predicated region
    $region22: #{tpu_custom_call.1} parent=1 // pred_check
      %p166 = pneg %p40
    $region23: #{tpu_custom_call.1} parent=1 // pred_check_branch
      %168 = sbr.rel (%p166) target = $region25
    $region24: #{tpu_custom_call.1} parent=1 // pred_region
      %v169 = vld [vmem:[#allocation2] sm:$0xff]
      %v170 = vld [vmem:[#allocation2 + $0x8] sm:$0xff]
      %v171 = vld [vmem:[#allocation2 + $0x10] sm:$0xff]
      %v172 = vld [vmem:[#allocation2 + $0x18] sm:$0xff]
      %173 = vst [vmem:[#allocation8] sm:$0xff] %v169
      %174 = vst [vmem:[#allocation8 + $0x8] sm:$0xff] %v170
      %175 = vst [vmem:[#allocation8 + $0x10] sm:$0xff] %v171
      %176 = vst [vmem:[#allocation8 + $0x18] sm:$0xff] %v172
    $region25: #{tpu_custom_call.1} parent=1 // pred_fallthru
      _
    // Predicated region
    $region26: #{tpu_custom_call.1} parent=1 // pred_check
      _
    $region27: #{tpu_custom_call.1} parent=1 // pred_check_branch
      %178 = sbr.rel (0) target = $region29
    $region28: #{tpu_custom_call.1} parent=1 // pred_region
      %s180 = ssub.s32 512, 512
      %181 = vsyncadd [#allocation5], %s180
      %s182 = sshll.u32 [#allocation8], 4
      %s183 = int_to_ptr.vmem [resolvable:$true] %s182
      %188 = dma.vmem_to_hbm [thread:$0]  %s183, 512, %s2, [#allocation5], 128, 128, 8
    $region29: #{tpu_custom_call.1} parent=1 // pred_fallthru
      _
    // Predicated region
    $region30: #{tpu_custom_call.1} parent=1 // pred_check
      _
    $region31: #{tpu_custom_call.1} parent=1 // pred_check_branch
      %190 = sbr.rel (0) target = $region33
    $region32: #{tpu_custom_call.1} parent=1 // pred_region
      %191 = dma.done [#allocation5], 512
    $region33: #{tpu_custom_call.1} parent=1 // pred_fallthru
      _
    %192 = vsyncpa [#allocation4], 1
    %193 = vsyncpa [#allocation7], 1
    %194 = vsyncpa [#allocation5], 1

</llo_original>
